<compile_context>
chip_gen: v7x
topology: tpu7x:2x2x1
jax: 0.10.0
libtpu: 0.0.40
codegen_flags: <defaults>
</compile_context>

<pallas_src>
import jax
import jax.numpy as jnp
from jax.experimental import pallas as pl
from jax.experimental.pallas import tpu as pltpu


def _tl_nn4_kernel(scal_ref, w_ref, x1_ref, x2_ref, x3_ref, out_ref):
    # scal_ref (SMEM f32[13]):
    #   [0:3]  s_i = 0.5*t_i      [3:6]  b_i = 0.5*b_i
    #   [6:9]  c_i = 1 - beta_i + 0.5   (per-branch constant; softmax sums to 1)
    #   [9:12] m_i = softmax(A4)[i]     [12]  c4 = 1 - beta4
    # w_ref : f32[T, 3] columns of 0.5 * softmax(A_i)   (lane i = branch i)
    # x*_ref: (bn, T) blocks of the native-layout inputs, batch on sublanes.
    w = w_ref[...]                                               # (T, 3)
    acts = []
    for i, x_ref in enumerate((x1_ref, x2_ref, x3_ref)):
        # Transpose on the XLU so batch lands on lanes (fully lane-dense).
        xt = jnp.transpose(x_ref[...].astype(jnp.float32))       # (T, bn)
        # sigmoid(z) = 0.5 + 0.5*tanh(z/2): one EUP transcendental / element.
        th = jnp.tanh(xt * scal_ref[i] - scal_ref[3 + i])        # (T, bn)
        # Weighted sum over T: cheap sublane (XLU) reduction -> (1, bn).
        wsum = jnp.sum(th * w[:, i:i + 1], axis=0, keepdims=True)
        acts.append(jnp.clip(wsum + scal_ref[6 + i], 0.0, 1.0))
    mix = (scal_ref[9] * acts[0] + scal_ref[10] * acts[1]
           + scal_ref[11] * acts[2] + scal_ref[12])
    out_ref[...] = jnp.clip(mix, 0.0, 1.0)                       # (1, bn)


def _round_up(v, m):
    return ((v + m - 1) // m) * m


def tl_nn4_forward(params_vec, a123, a4, x1, x2, x3, *, block_n=16384):
    """params_vec: f32[10] = [t1,t2,t3,b1,b2,b3,beta1,beta2,beta3,beta4]
       a123: f32[3, T] (stacked A1,A2,A3), a4: f32[1, 3], x*: (N, T)."""
    n, t_dim = x1.shape
    lane = 128

    t = params_vec[0:3].astype(jnp.float32)
    b = params_vec[3:6].astype(jnp.float32)
    beta = params_vec[6:10].astype(jnp.float32)

    # --- tiny, data-independent preprocessing (pure JAX, O(T)) ---
    a_sm = jax.nn.softmax(a123.astype(jnp.float32), axis=1)          # (3, T)
    a4_sm = jax.nn.softmax(a4.astype(jnp.float32), axis=1).reshape(3)
    scal = jnp.concatenate([
        0.5 * t,                # s_i
        0.5 * b,                # b_i
        1.5 - beta[0:3],        # c_i = 1 - beta_i + 0.5
        a4_sm,                  # m_i
        1.0 - beta[3:4],        # c4
    ]).astype(jnp.float32)                                           # f32[13]
    w_half = (0.5 * a_sm).T.astype(jnp.float32)                      # (T, 3)

    # --- generation-aware VMEM budgeting & lane-block selection ---
    try:
        phys_vmem = int(getattr(pltpu.get_tpu_info(), "vmem_capacity_bytes",
                                64 * 1024 * 1024))
    except Exception:  # pragma: no cover - conservative fallback
        phys_vmem = 64 * 1024 * 1024
    big_vmem = phys_vmem >= 100 * 1024 * 1024            # v5e / v6e: 128 MiB
    vmem_limit = (64 if big_vmem else 32) * 1024 * 1024
    stream_budget = (24 if big_vmem else 12) * 1024 * 1024

    itemsize = jnp.dtype(x1.dtype).itemsize
    # (bn, T) tiles are lane-padded to 128 in VMEM; 3 inputs, double-buffered.
    per_lane_bytes = 3 * 2 * _round_up(t_dim, lane) * itemsize
    bn_cap = max(lane, (stream_budget // per_lane_bytes) // lane * lane)

    n128 = _round_up(max(n, 1), lane)
    bn = min(block_n, bn_cap, n128)
    if n128 >= 2 * lane:          # keep >= 2 grid blocks so both v7x TCs work
        bn = min(bn, max(lane, _round_up(n128 // 2, lane)))
    bn = max(bn, lane)

    # Only batches smaller than one lane block get explicitly padded (cheap);
    # otherwise the cdiv grid relies on Pallas boundary-block padding/masking
    # and padded lanes are sliced off below.
    n_eff = n
    if n < bn:
        pad = bn - n
        x1 = jnp.pad(x1, ((0, pad), (0, 0)))
        x2 = jnp.pad(x2, ((0, pad), (0, 0)))
        x3 = jnp.pad(x3, ((0, pad), (0, 0)))
        n_eff = bn

    grid = (pl.cdiv(n_eff, bn),)
    x_spec = pl.BlockSpec((bn, t_dim), lambda i, s: (i, 0))

    out = pl.pallas_call(
        _tl_nn4_kernel,
        out_shape=jax.ShapeDtypeStruct((1, n_eff), jnp.float32),
        grid_spec=pltpu.PrefetchScalarGridSpec(
            num_scalar_prefetch=1,            # scal -> SMEM before the grid
            grid=grid,
            in_specs=[
                pl.BlockSpec((t_dim, 3), lambda i, s: (0, 0)),   # 0.5*softmax(A_i)
                x_spec,                                          # x1 (native layout)
                x_spec,                                          # x2
                x_spec,                                          # x3
            ],
            out_specs=pl.BlockSpec((1, bn), lambda i, s: (0, i)),
        ),
        compiler_params=pltpu.CompilerParams(
            dimension_semantics=("parallel",),
            vmem_limit_bytes=vmem_limit,
        ),
    )(scal, w_half, x1, x2, x3)
    return out.reshape(-1)[:n]      # matches activate4.reshape([-1])


def _reference(params_vec, a123, a4, x1, x2, x3):
    """Pure-JAX reference mirroring the PyTorch forward."""
    t = params_vec[0:3]
    b = params_vec[3:6]
    beta = params_vec[6:10]

    def branch(x, i):
        r = jax.nn.sigmoid(x * t[i] - b[i])
        a_sm = jax.nn.softmax(a123[i:i + 1, :], axis=1)
        wb = 1.0 - beta[i] + jnp.sum(a_sm * r, axis=1)
        return jnp.clip(wb, 0.0, 1.0).reshape(-1, 1)

    act = jnp.concatenate([branch(x1, 0), branch(x2, 1), branch(x3, 2)], axis=1)
    a4_sm = jax.nn.softmax(a4, axis=1)
    wb4 = 1.0 - beta[3] + jnp.sum(a4_sm * act, axis=1)
    return jnp.clip(wb4, 0.0, 1.0).reshape(-1)


if __name__ == "__main__":
    key = jax.random.PRNGKey(0)
    N, T = 8, 16

    keys = jax.random.split(key, 12)
    # deterministic parameter init matching the torch shapes / distributions
    t1 = 1e-5 * jax.random.normal(keys[0], (1, 1))
    t2 = 1e-5 * jax.random.normal(keys[1], (1, 1))
    t3 = 1e-5 * jax.random.normal(keys[2], (1, 1))
    b1 = jax.random.normal(keys[3], (1, 1))
    b2 = jax.random.normal(keys[4], (1, 1))
    b3 = jax.random.normal(keys[5], (1, 1))
    A1 = jax.random.uniform(keys[6], (1, T))
    A2 = jax.random.uniform(keys[7], (1, T))
    A3 = jax.random.uniform(keys[8], (1, T))
    A4 = jax.random.uniform(keys[9], (1, 3))
    beta1 = beta2 = beta3 = beta4 = jnp.float32(1.0)

    params_vec = jnp.array(
        [t1[0, 0], t2[0, 0], t3[0, 0],
         b1[0, 0], b2[0, 0], b3[0, 0],
         beta1, beta2, beta3, beta4], dtype=jnp.float32)
    a123 = jnp.concatenate([A1, A2, A3], axis=0).astype(jnp.float32)   # (3, T)
    a4 = A4.astype(jnp.float32)                                        # (1, 3)

    x1 = jax.random.normal(keys[10], (N, T), dtype=jnp.float32)
    x2 = jax.random.normal(keys[11], (N, T), dtype=jnp.float32)
    x3 = jax.random.normal(jax.random.fold_in(key, 99), (N, T), dtype=jnp.float32)

    out = tl_nn4_forward(params_vec, a123, a4, x1, x2, x3)
    out = jax.block_until_ready(out)

    ref = _reference(params_vec, a123, a4, x1, x2, x3)
    assert out.shape == (N,)
    assert jnp.allclose(out, ref, atol=1e-5, rtol=1e-5), (out, ref)

    print("KERNEL_OK")
</pallas_src>

<mosaic_0001>
module attributes {stable_mosaic.version = 11 : i64} {
  func.func @_tl_nn4_kernel(%arg0: i32, %arg1: memref<13xf32, #tpu.memory_space<smem>>, %arg2: memref<16x3xf32, #tpu.memory_space<vmem>>, %arg3: memref<128x16xf32, #tpu.memory_space<vmem>>, %arg4: memref<128x16xf32, #tpu.memory_space<vmem>>, %arg5: memref<128x16xf32, #tpu.memory_space<vmem>>, %arg6: memref<1x128xf32, #tpu.memory_space<vmem>>) attributes {dimension_semantics = [#tpu.dimension_semantics<parallel>], iteration_bounds = array<i64: 1>, scalar_prefetch = 1 : i64, scratch_operands = 0 : i64, tpu.core_type = #tpu.core_type<tc>, window_params = [{pipeline_mode = #tpu.pipeline_mode<synchronous>, transform_indices = @transform_0, window_bounds = array<i64: 16, 3>}, {transform_indices = @transform_1, window_bounds = array<i64: 128, 16>}, {transform_indices = @transform_2, window_bounds = array<i64: 128, 16>}, {transform_indices = @transform_3, window_bounds = array<i64: 128, 16>}, {transform_indices = @transform_4, window_bounds = array<i64: 1, 128>}]} {
    %c0 = arith.constant 0 : index
    %c0_0 = arith.constant 0 : index
    %0 = vector.load %arg2[%c0, %c0_0] : memref<16x3xf32, #tpu.memory_space<vmem>>, vector<16x3xf32>
    %c0_1 = arith.constant 0 : index
    %c0_2 = arith.constant 0 : index
    %1 = vector.load %arg3[%c0_1, %c0_2] : memref<128x16xf32, #tpu.memory_space<vmem>>, vector<128x16xf32>
    %2 = tpu.transpose %1, [1, 0] : vector<128x16xf32> -> vector<16x128xf32>
    %c0_3 = arith.constant 0 : index
    %3 = memref.load %arg1[%c0_3] : memref<13xf32, #tpu.memory_space<smem>>
    %4 = vector.broadcast %3 : f32 to vector<16x128xf32>
    %5 = arith.mulf %2, %4 : vector<16x128xf32>
    %c3 = arith.constant 3 : index
    %6 = memref.load %arg1[%c3] : memref<13xf32, #tpu.memory_space<smem>>
    %7 = vector.broadcast %6 : f32 to vector<16x128xf32>
    %8 = arith.subf %5, %7 : vector<16x128xf32>
    %9 = math.tanh %8 : vector<16x128xf32>
    %10 = vector.extract_strided_slice %0 {offsets = [0, 0], sizes = [16, 1], strides = [1, 1]} : vector<16x3xf32> to vector<16x1xf32>
    %11 = vector.broadcast %10 : vector<16x1xf32> to vector<16x128xf32>
    %12 = arith.mulf %9, %11 : vector<16x128xf32>
    %cst = arith.constant dense<0.000000e+00> : vector<128xf32>
    %13 = vector.multi_reduction <add>, %12, %cst [0] : vector<16x128xf32> to vector<128xf32>
    %14 = vector.shape_cast %13 : vector<128xf32> to vector<1x128xf32>
    %c6 = arith.constant 6 : index
    %15 = memref.load %arg1[%c6] : memref<13xf32, #tpu.memory_space<smem>>
    %16 = vector.broadcast %15 : f32 to vector<1x128xf32>
    %17 = arith.addf %14, %16 : vector<1x128xf32>
    %cst_4 = arith.constant 0.000000e+00 : f32
    %cst_5 = arith.constant 1.000000e+00 : f32
    %18 = vector.broadcast %cst_4 : f32 to vector<1x128xf32>
    %19 = arith.maximumf %18, %17 : vector<1x128xf32>
    %20 = vector.broadcast %cst_5 : f32 to vector<1x128xf32>
    %21 = arith.minimumf %20, %19 : vector<1x128xf32>
    %c0_6 = arith.constant 0 : index
    %c0_7 = arith.constant 0 : index
    %22 = vector.load %arg4[%c0_6, %c0_7] : memref<128x16xf32, #tpu.memory_space<vmem>>, vector<128x16xf32>
    %23 = tpu.transpose %22, [1, 0] : vector<128x16xf32> -> vector<16x128xf32>
    %c1 = arith.constant 1 : index
    %24 = memref.load %arg1[%c1] : memref<13xf32, #tpu.memory_space<smem>>
    %25 = vector.broadcast %24 : f32 to vector<16x128xf32>
    %26 = arith.mulf %23, %25 : vector<16x128xf32>
    %c4 = arith.constant 4 : index
    %27 = memref.load %arg1[%c4] : memref<13xf32, #tpu.memory_space<smem>>
    %28 = vector.broadcast %27 : f32 to vector<16x128xf32>
    %29 = arith.subf %26, %28 : vector<16x128xf32>
    %30 = math.tanh %29 : vector<16x128xf32>
    %31 = vector.extract_strided_slice %0 {offsets = [0, 1], sizes = [16, 1], strides = [1, 1]} : vector<16x3xf32> to vector<16x1xf32>
    %32 = vector.broadcast %31 : vector<16x1xf32> to vector<16x128xf32>
    %33 = arith.mulf %30, %32 : vector<16x128xf32>
    %cst_8 = arith.constant dense<0.000000e+00> : vector<128xf32>
    %34 = vector.multi_reduction <add>, %33, %cst_8 [0] : vector<16x128xf32> to vector<128xf32>
    %35 = vector.shape_cast %34 : vector<128xf32> to vector<1x128xf32>
    %c7 = arith.constant 7 : index
    %36 = memref.load %arg1[%c7] : memref<13xf32, #tpu.memory_space<smem>>
    %37 = vector.broadcast %36 : f32 to vector<1x128xf32>
    %38 = arith.addf %35, %37 : vector<1x128xf32>
    %cst_9 = arith.constant 0.000000e+00 : f32
    %cst_10 = arith.constant 1.000000e+00 : f32
    %39 = vector.broadcast %cst_9 : f32 to vector<1x128xf32>
    %40 = arith.maximumf %39, %38 : vector<1x128xf32>
    %41 = vector.broadcast %cst_10 : f32 to vector<1x128xf32>
    %42 = arith.minimumf %41, %40 : vector<1x128xf32>
    %c0_11 = arith.constant 0 : index
    %c0_12 = arith.constant 0 : index
    %43 = vector.load %arg5[%c0_11, %c0_12] : memref<128x16xf32, #tpu.memory_space<vmem>>, vector<128x16xf32>
    %44 = tpu.transpose %43, [1, 0] : vector<128x16xf32> -> vector<16x128xf32>
    %c2 = arith.constant 2 : index
    %45 = memref.load %arg1[%c2] : memref<13xf32, #tpu.memory_space<smem>>
    %46 = vector.broadcast %45 : f32 to vector<16x128xf32>
    %47 = arith.mulf %44, %46 : vector<16x128xf32>
    %c5 = arith.constant 5 : index
    %48 = memref.load %arg1[%c5] : memref<13xf32, #tpu.memory_space<smem>>
    %49 = vector.broadcast %48 : f32 to vector<16x128xf32>
    %50 = arith.subf %47, %49 : vector<16x128xf32>
    %51 = math.tanh %50 : vector<16x128xf32>
    %52 = vector.extract_strided_slice %0 {offsets = [0, 2], sizes = [16, 1], strides = [1, 1]} : vector<16x3xf32> to vector<16x1xf32>
    %53 = vector.broadcast %52 : vector<16x1xf32> to vector<16x128xf32>
    %54 = arith.mulf %51, %53 : vector<16x128xf32>
    %cst_13 = arith.constant dense<0.000000e+00> : vector<128xf32>
    %55 = vector.multi_reduction <add>, %54, %cst_13 [0] : vector<16x128xf32> to vector<128xf32>
    %56 = vector.shape_cast %55 : vector<128xf32> to vector<1x128xf32>
    %c8 = arith.constant 8 : index
    %57 = memref.load %arg1[%c8] : memref<13xf32, #tpu.memory_space<smem>>
    %58 = vector.broadcast %57 : f32 to vector<1x128xf32>
    %59 = arith.addf %56, %58 : vector<1x128xf32>
    %cst_14 = arith.constant 0.000000e+00 : f32
    %cst_15 = arith.constant 1.000000e+00 : f32
    %60 = vector.broadcast %cst_14 : f32 to vector<1x128xf32>
    %61 = arith.maximumf %60, %59 : vector<1x128xf32>
    %62 = vector.broadcast %cst_15 : f32 to vector<1x128xf32>
    %63 = arith.minimumf %62, %61 : vector<1x128xf32>
    %c9 = arith.constant 9 : index
    %64 = memref.load %arg1[%c9] : memref<13xf32, #tpu.memory_space<smem>>
    %65 = vector.broadcast %64 : f32 to vector<1x128xf32>
    %66 = arith.mulf %65, %21 : vector<1x128xf32>
    %c10 = arith.constant 10 : index
    %67 = memref.load %arg1[%c10] : memref<13xf32, #tpu.memory_space<smem>>
    %68 = vector.broadcast %67 : f32 to vector<1x128xf32>
    %69 = arith.mulf %68, %42 : vector<1x128xf32>
    %70 = arith.addf %66, %69 : vector<1x128xf32>
    %c11 = arith.constant 11 : index
    %71 = memref.load %arg1[%c11] : memref<13xf32, #tpu.memory_space<smem>>
    %72 = vector.broadcast %71 : f32 to vector<1x128xf32>
    %73 = arith.mulf %72, %63 : vector<1x128xf32>
    %74 = arith.addf %70, %73 : vector<1x128xf32>
    %c12 = arith.constant 12 : index
    %75 = memref.load %arg1[%c12] : memref<13xf32, #tpu.memory_space<smem>>
    %76 = vector.broadcast %75 : f32 to vector<1x128xf32>
    %77 = arith.addf %74, %76 : vector<1x128xf32>
    %cst_16 = arith.constant 0.000000e+00 : f32
    %cst_17 = arith.constant 1.000000e+00 : f32
    %78 = vector.broadcast %cst_16 : f32 to vector<1x128xf32>
    %79 = arith.maximumf %78, %77 : vector<1x128xf32>
    %80 = vector.broadcast %cst_17 : f32 to vector<1x128xf32>
    %81 = arith.minimumf %80, %79 : vector<1x128xf32>
    %c0_18 = arith.constant 0 : index
    %c0_19 = arith.constant 0 : index
    %82 = vector.load %arg6[%c0_18, %c0_19] : memref<1x128xf32, #tpu.memory_space<vmem>>, vector<1x128xf32>
    tpu.vector_store %arg6[%c0_18, %c0_19], %81 {strides = array<i32>} : memref<1x128xf32, #tpu.memory_space<vmem>>, vector<1x128xf32>,
    return
  }
  func.func @transform_0(%arg0: i32, %arg1: memref<13xf32, #tpu.memory_space<smem>>) -> (i32, i32) {
    %c0_i32 = arith.constant 0 : i32
    %c0_i32_0 = arith.constant 0 : i32
    %c0_i32_1 = arith.constant 0 : i32
    return %c0_i32, %c0_i32_0 : i32, i32
  }
  func.func @transform_1(%arg0: i32, %arg1: memref<13xf32, #tpu.memory_space<smem>>) -> (i32, i32) {
    %c0_i32 = arith.constant 0 : i32
    %c0_i32_0 = arith.constant 0 : i32
    return %arg0, %c0_i32 : i32, i32
  }
  func.func @transform_2(%arg0: i32, %arg1: memref<13xf32, #tpu.memory_space<smem>>) -> (i32, i32) {
    %c0_i32 = arith.constant 0 : i32
    %c0_i32_0 = arith.constant 0 : i32
    return %arg0, %c0_i32 : i32, i32
  }
  func.func @transform_3(%arg0: i32, %arg1: memref<13xf32, #tpu.memory_space<smem>>) -> (i32, i32) {
    %c0_i32 = arith.constant 0 : i32
    %c0_i32_0 = arith.constant 0 : i32
    return %arg0, %c0_i32 : i32, i32
  }
  func.func @transform_4(%arg0: i32, %arg1: memref<13xf32, #tpu.memory_space<smem>>) -> (i32, i32) {
    %c0_i32 = arith.constant 0 : i32
    %c0_i32_0 = arith.constant 0 : i32
    return %c0_i32, %arg0 : i32, i32
  }
}

</mosaic_0001>

<llo_original>
// kernel: tpu_custom_call.1
$region0: #{tpu_custom_call.1}
  #allocation0 [shape = 'u32[]', space=smem, size = 0x4, offset = 0x4, fixed_abs, tag = 'smem constant byte address 0x4 - core index']
  #allocation1 [shape = 'u32[144,128]{1,0:T(1,128)}', space=vmem, size = 0x12000, scoped, tag = 'internal scratch']
  #allocation2 [shape = 's32[1]{0}', space=sflag, size = 0x4, scoped, tag = 'scoped memory for tpu_custom_call.1']
  #allocation3 [shape = 'u8[512]{0}', space=smem, size = 0x200, scoped, tag = 'prefetched SMEM operand 0']
  %s0 = inlined_call_operand.vmem [shape: f32[13], index: 0, kind: input, shape index: {}]
  %s1 = inlined_call_operand.vmem [shape: f32[16,3], index: 1, kind: input, shape index: {}]
  %s2 = inlined_call_operand.vmem [shape: f32[128,16], index: 2, kind: input, shape index: {}]
  %s3 = inlined_call_operand.vmem [shape: f32[128,16], index: 3, kind: input, shape index: {}]
  %s4 = inlined_call_operand.vmem [shape: f32[128,16], index: 4, kind: input, shape index: {}]
  %s5 = inlined_call_operand.hbm [shape: f32[1,128], index: 5, kind: output, shape index: {}]
  %s6 = sld [smem:[#allocation0]]
  $region26: #{tpu_custom_call.1} parent=0
    _
  %s8 = ssub.s32 1, %s6
  %s9 = scalar_select 0, %s8, %s6
  %s10 = sshll.u32 %s0, 4
  %s11 = int_to_ptr.vmem [resolvable:$true] %s10
  %13 = dma.vmem_to_smem %s11, 16, [#allocation3], [#allocation2]
  %14 = dma.done [#allocation2], 16
  %15 = sfence
  $region1: #{tpu_custom_call.1} parent=0
    #allocation4 [shape = 'u8[512]{0}', space=vmem, size = 0x400, scoped, tag = 'output window, operand 0, single buffered']
    #allocation5 [shape = 's32[1]{0}', space=sflag, size = 0x4, scoped, tag = 'scoped memory for tpu_custom_call.1']
    %16 = vsyncpa [#allocation5], 0
    // Predicated region
    $region2: #{tpu_custom_call.1} parent=1 // pred_check
      _
    $region3: #{tpu_custom_call.1} parent=1 // pred_check_branch
      %18 = sbr.rel (0) target = $region5
    $region4: #{tpu_custom_call.1} parent=1 // pred_region
      _
    $region5: #{tpu_custom_call.1} parent=1 // pred_fallthru
      _
    // Predicated region
    $region6: #{tpu_custom_call.1} parent=1 // pred_check
      _
    $region7: #{tpu_custom_call.1} parent=1 // pred_check_branch
      %20 = sbr.rel (0) target = $region9
    $region8: #{tpu_custom_call.1} parent=1 // pred_region
      _
    $region9: #{tpu_custom_call.1} parent=1 // pred_fallthru
      _
    // Predicated region
    $region10: #{tpu_custom_call.1} parent=1 // pred_check
      _
    $region11: #{tpu_custom_call.1} parent=1 // pred_check_branch
      %22 = sbr.rel (0) target = $region13
    $region12: #{tpu_custom_call.1} parent=1 // pred_region
      _
    $region13: #{tpu_custom_call.1} parent=1 // pred_fallthru
      _
    // Predicated region
    $region14: #{tpu_custom_call.1} parent=1 // pred_check
      _
    $region15: #{tpu_custom_call.1} parent=1 // pred_check_branch
      %24 = sbr.rel (0) target = $region17
    $region16: #{tpu_custom_call.1} parent=1 // pred_region
      _
    $region17: #{tpu_custom_call.1} parent=1 // pred_fallthru
      _
    %v25 = vld [vmem:[%s1] sm:$0xff]
    %v26 = vld [vmem:[%s1 + $0x8] sm:$0xff]
    %v27 = vld [vmem:[%s2] sm:$0xff]
    %v28 = vld [vmem:[%s2 + $0x8] sm:$0xff]
    %v29 = vld [vmem:[%s2 + $0x10] sm:$0xff]
    %v30 = vld [vmem:[%s2 + $0x18] sm:$0xff]
    %v31 = vld [vmem:[%s2 + $0x20] sm:$0xff]
    %v32 = vld [vmem:[%s2 + $0x28] sm:$0xff]
    %v33 = vld [vmem:[%s2 + $0x30] sm:$0xff]
    %v34 = vld [vmem:[%s2 + $0x38] sm:$0xff]
    %v35 = vld [vmem:[%s2 + $0x40] sm:$0xff]
    %v36 = vld [vmem:[%s2 + $0x48] sm:$0xff]
    %v37 = vld [vmem:[%s2 + $0x50] sm:$0xff]
    %v38 = vld [vmem:[%s2 + $0x58] sm:$0xff]
    %v39 = vld [vmem:[%s2 + $0x60] sm:$0xff]
    %v40 = vld [vmem:[%s2 + $0x68] sm:$0xff]
    %v41 = vld [vmem:[%s2 + $0x70] sm:$0xff]
    %v42 = vld [vmem:[%s2 + $0x78] sm:$0xff]
    %43 = vxpose.xlu0.b32.start [1/16] %v27, 128
    %44 = vxpose.xlu0.b32.cont [2/16] %v28, 128
    %45 = vxpose.xlu0.b32.cont [3/16] %v29, 128
    %46 = vxpose.xlu0.b32.cont [4/16] %v30, 128
    %47 = vxpose.xlu0.b32.cont [5/16] %v31, 128
    %48 = vxpose.xlu0.b32.cont [6/16] %v32, 128
    %49 = vxpose.xlu0.b32.cont [7/16] %v33, 128
    %50 = vxpose.xlu0.b32.cont [8/16] %v34, 128
    %51 = vxpose.xlu0.b32.cont [9/16] %v35, 128
    %52 = vxpose.xlu0.b32.cont [10/16] %v36, 128
    %53 = vxpose.xlu0.b32.cont [11/16] %v37, 128
    %54 = vxpose.xlu0.b32.cont [12/16] %v38, 128
    %55 = vxpose.xlu0.b32.cont [13/16] %v39, 128
    %56 = vxpose.xlu0.b32.cont [14/16] %v40, 128
    %57 = vxpose.xlu0.b32.cont [15/16] %v41, 128
    %58 = vxpose.xlu0.b32.end [16/16] %v42, 128
    %v59 = vpop.trf.xlu0
    %v60 = vpop.trf.xlu0
    %v61 = vpop.trf.xlu0
    %v62 = vpop.trf.xlu0
    %v63 = vpop.trf.xlu0
    %v64 = vpop.trf.xlu0
    %v65 = vpop.trf.xlu0
    %v66 = vpop.trf.xlu0
    %v67 = vpop.trf.xlu0
    %v68 = vpop.trf.xlu0
    %v69 = vpop.trf.xlu0
    %v70 = vpop.trf.xlu0
    %v71 = vpop.trf.xlu0
    %v72 = vpop.trf.xlu0
    %v73 = vpop.trf.xlu0
    %v74 = vpop.trf.xlu0
    %s75 = sld [smem:[#allocation3]]
    %v76 = vstv %s75
    %v77 = vmul.f32 %v59, %v76
    %v78 = vmul.f32 %v60, %v76
    %s79 = sld [smem:[#allocation3 + $0x3]]
    %v80 = vstv %s79
    %v81 = vsub.f32 %v77, %v80
    %v82 = vsub.f32 %v78, %v80
    %v83 = vtanh.pop %v81
    %v84 = vtanh.pop %v82
    %86 = vset.pattern.permute.xlu0 0
    %87 = vperm.xlu0 %86, %v25
    %v88 = vpop.permute.xlu0 %87
    %91 = vset.pattern.permute.xlu0 0
    %92 = vperm.xlu0 %91, %v26
    %v93 = vpop.permute.xlu0 %92
    %v95 = vmul.f32 %v83, %v88
    %v96 = vmul.f32 %v84, %v93
    %v97 = vadd.f32 %v95, %v96
    %v98 = vrot.slane %v97, 4
    %v99 = vadd.f32 %v97, %v98
    %v100 = vrot.slane %v99, 2
    %v101 = vadd.f32 %v99, %v100
    %v102 = vrot.slane %v101, 1
    %v103 = vadd.f32 %v101, %v102
    %s104 = sld [smem:[#allocation3 + $0x6]]
    %v105 = vstv %s104
    %v106 = vadd.f32 %v103, %v105
    %v107 = vmax.f32 %v106, 0.0
    %v108 = vmin.f32 %v107, 1.0
    %v109 = vld [vmem:[%s3] sm:$0xff]
    %v110 = vld [vmem:[%s3 + $0x8] sm:$0xff]
    %v111 = vld [vmem:[%s3 + $0x10] sm:$0xff]
    %v112 = vld [vmem:[%s3 + $0x18] sm:$0xff]
    %v113 = vld [vmem:[%s3 + $0x20] sm:$0xff]
    %v114 = vld [vmem:[%s3 + $0x28] sm:$0xff]
    %v115 = vld [vmem:[%s3 + $0x30] sm:$0xff]
    %v116 = vld [vmem:[%s3 + $0x38] sm:$0xff]
    %v117 = vld [vmem:[%s3 + $0x40] sm:$0xff]
    %v118 = vld [vmem:[%s3 + $0x48] sm:$0xff]
    %v119 = vld [vmem:[%s3 + $0x50] sm:$0xff]
    %v120 = vld [vmem:[%s3 + $0x58] sm:$0xff]
    %v121 = vld [vmem:[%s3 + $0x60] sm:$0xff]
    %v122 = vld [vmem:[%s3 + $0x68] sm:$0xff]
    %v123 = vld [vmem:[%s3 + $0x70] sm:$0xff]
    %v124 = vld [vmem:[%s3 + $0x78] sm:$0xff]
    %125 = vxpose.xlu0.b32.start [1/16] %v109, 128
    %126 = vxpose.xlu0.b32.cont [2/16] %v110, 128
    %127 = vxpose.xlu0.b32.cont [3/16] %v111, 128
    %128 = vxpose.xlu0.b32.cont [4/16] %v112, 128
    %129 = vxpose.xlu0.b32.cont [5/16] %v113, 128
    %130 = vxpose.xlu0.b32.cont [6/16] %v114, 128
    %131 = vxpose.xlu0.b32.cont [7/16] %v115, 128
    %132 = vxpose.xlu0.b32.cont [8/16] %v116, 128
    %133 = vxpose.xlu0.b32.cont [9/16] %v117, 128
    %134 = vxpose.xlu0.b32.cont [10/16] %v118, 128
    %135 = vxpose.xlu0.b32.cont [11/16] %v119, 128
    %136 = vxpose.xlu0.b32.cont [12/16] %v120, 128
    %137 = vxpose.xlu0.b32.cont [13/16] %v121, 128
    %138 = vxpose.xlu0.b32.cont [14/16] %v122, 128
    %139 = vxpose.xlu0.b32.cont [15/16] %v123, 128
    %140 = vxpose.xlu0.b32.end [16/16] %v124, 128
    %v141 = vpop.trf.xlu0
    %v142 = vpop.trf.xlu0
    %v143 = vpop.trf.xlu0
    %v144 = vpop.trf.xlu0
    %v145 = vpop.trf.xlu0
    %v146 = vpop.trf.xlu0
    %v147 = vpop.trf.xlu0
    %v148 = vpop.trf.xlu0
    %v149 = vpop.trf.xlu0
    %v150 = vpop.trf.xlu0
    %v151 = vpop.trf.xlu0
    %v152 = vpop.trf.xlu0
    %v153 = vpop.trf.xlu0
    %v154 = vpop.trf.xlu0
    %v155 = vpop.trf.xlu0
    %v156 = vpop.trf.xlu0
    %s157 = sld [smem:[#allocation3 + $0x1]]
    %v158 = vstv %s157
    %v159 = vmul.f32 %v141, %v158
    %v160 = vmul.f32 %v142, %v158
    %s161 = sld [smem:[#allocation3 + $0x4]]
    %v162 = vstv %s161
    %v163 = vsub.f32 %v159, %v162
    %v164 = vsub.f32 %v160, %v162
    %v165 = vtanh.pop %v163
    %v166 = vtanh.pop %v164
    %167 = vset.pattern.permute.xlu0 1
    %168 = vperm.xlu0 %167, %v25
    %v169 = vpop.permute.xlu0 %168
    %171 = vset.pattern.permute.xlu0 1
    %172 = vperm.xlu0 %171, %v26
    %v173 = vpop.permute.xlu0 %172
    %v175 = vmul.f32 %v165, %v169
    %v176 = vmul.f32 %v166, %v173
    %v177 = vadd.f32 %v175, %v176
    %v178 = vrot.slane %v177, 4
    %v179 = vadd.f32 %v177, %v178
    %v180 = vrot.slane %v179, 2
    %v181 = vadd.f32 %v179, %v180
    %v182 = vrot.slane %v181, 1
    %v183 = vadd.f32 %v181, %v182
    %s184 = sld [smem:[#allocation3 + $0x7]]
    %v185 = vstv %s184
    %v186 = vadd.f32 %v183, %v185
    %v187 = vmax.f32 %v186, 0.0
    %v188 = vmin.f32 %v187, 1.0
    %v189 = vld [vmem:[%s4] sm:$0xff]
    %v190 = vld [vmem:[%s4 + $0x8] sm:$0xff]
    %v191 = vld [vmem:[%s4 + $0x10] sm:$0xff]
    %v192 = vld [vmem:[%s4 + $0x18] sm:$0xff]
    %v193 = vld [vmem:[%s4 + $0x20] sm:$0xff]
    %v194 = vld [vmem:[%s4 + $0x28] sm:$0xff]
    %v195 = vld [vmem:[%s4 + $0x30] sm:$0xff]
    %v196 = vld [vmem:[%s4 + $0x38] sm:$0xff]
    %v197 = vld [vmem:[%s4 + $0x40] sm:$0xff]
    %v198 = vld [vmem:[%s4 + $0x48] sm:$0xff]
    %v199 = vld [vmem:[%s4 + $0x50] sm:$0xff]
    %v200 = vld [vmem:[%s4 + $0x58] sm:$0xff]
    %v201 = vld [vmem:[%s4 + $0x60] sm:$0xff]
    %v202 = vld [vmem:[%s4 + $0x68] sm:$0xff]
    %v203 = vld [vmem:[%s4 + $0x70] sm:$0xff]
    %v204 = vld [vmem:[%s4 + $0x78] sm:$0xff]
    %205 = vxpose.xlu0.b32.start [1/16] %v189, 128
    %206 = vxpose.xlu0.b32.cont [2/16] %v190, 128
    %207 = vxpose.xlu0.b32.cont [3/16] %v191, 128
    %208 = vxpose.xlu0.b32.cont [4/16] %v192, 128
    %209 = vxpose.xlu0.b32.cont [5/16] %v193, 128
    %210 = vxpose.xlu0.b32.cont [6/16] %v194, 128
    %211 = vxpose.xlu0.b32.cont [7/16] %v195, 128
    %212 = vxpose.xlu0.b32.cont [8/16] %v196, 128
    %213 = vxpose.xlu0.b32.cont [9/16] %v197, 128
    %214 = vxpose.xlu0.b32.cont [10/16] %v198, 128
    %215 = vxpose.xlu0.b32.cont [11/16] %v199, 128
    %216 = vxpose.xlu0.b32.cont [12/16] %v200, 128
    %217 = vxpose.xlu0.b32.cont [13/16] %v201, 128
    %218 = vxpose.xlu0.b32.cont [14/16] %v202, 128
    %219 = vxpose.xlu0.b32.cont [15/16] %v203, 128
    %220 = vxpose.xlu0.b32.end [16/16] %v204, 128
    %v221 = vpop.trf.xlu0
    %v222 = vpop.trf.xlu0
    %v223 = vpop.trf.xlu0
    %v224 = vpop.trf.xlu0
    %v225 = vpop.trf.xlu0
    %v226 = vpop.trf.xlu0
    %v227 = vpop.trf.xlu0
    %v228 = vpop.trf.xlu0
    %v229 = vpop.trf.xlu0
    %v230 = vpop.trf.xlu0
    %v231 = vpop.trf.xlu0
    %v232 = vpop.trf.xlu0
    %v233 = vpop.trf.xlu0
    %v234 = vpop.trf.xlu0
    %v235 = vpop.trf.xlu0
    %v236 = vpop.trf.xlu0
    %s237 = sld [smem:[#allocation3 + $0x2]]
    %v238 = vstv %s237
    %v239 = vmul.f32 %v221, %v238
    %v240 = vmul.f32 %v222, %v238
    %s241 = sld [smem:[#allocation3 + $0x5]]
    %v242 = vstv %s241
    %v243 = vsub.f32 %v239, %v242
    %v244 = vsub.f32 %v240, %v242
    %v245 = vtanh.pop %v243
    %v246 = vtanh.pop %v244
    %247 = vset.pattern.permute.xlu0 2
    %248 = vperm.xlu0 %247, %v25
    %v249 = vpop.permute.xlu0 %248
    %251 = vset.pattern.permute.xlu0 2
    %252 = vperm.xlu0 %251, %v26
    %v253 = vpop.permute.xlu0 %252
    %v255 = vmul.f32 %v245, %v249
    %v256 = vmul.f32 %v246, %v253
    %v257 = vadd.f32 %v255, %v256
    %v258 = vrot.slane %v257, 4
    %v259 = vadd.f32 %v257, %v258
    %v260 = vrot.slane %v259, 2
    %v261 = vadd.f32 %v259, %v260
    %v262 = vrot.slane %v261, 1
    %v263 = vadd.f32 %v261, %v262
    %s264 = sld [smem:[#allocation3 + $0x8]]
    %v265 = vstv %s264
    %v266 = vadd.f32 %v263, %v265
    %v267 = vmax.f32 %v266, 0.0
    %v268 = vmin.f32 %v267, 1.0
    %s269 = sld [smem:[#allocation3 + $0x9]]
    %v270 = vstv %s269
    %v271 = vmul.f32 %v270, %v108
    %s272 = sld [smem:[#allocation3 + $0xa]]
    %v273 = vstv %s272
    %v274 = vmul.f32 %v273, %v188
    %v275 = vadd.f32 %v271, %v274
    %s276 = sld [smem:[#allocation3 + $0xb]]
    %v277 = vstv %s276
    %v278 = vmul.f32 %v277, %v268
    %v279 = vadd.f32 %v275, %v278
    %s280 = sld [smem:[#allocation3 + $0xc]]
    %v281 = vstv %s280
    %v282 = vadd.f32 %v279, %v281
    %v283 = vmax.f32 %v282, 0.0
    %v284 = vmin.f32 %v283, 1.0
    %285 = vst [vmem:[#allocation4] sm:$0x1] %v284
    // Predicated region
    $region18: #{tpu_custom_call.1} parent=1 // pred_check
      _
    $region19: #{tpu_custom_call.1} parent=1 // pred_check_branch
      %287 = sbr.rel (0) target = $region21
    $region20: #{tpu_custom_call.1} parent=1 // pred_region
      %s289 = ssub.s32 16, 16
      %290 = vsyncadd [#allocation5], %s289
      %s292 = sshll.u32 [#allocation4], 4
      %s293 = int_to_ptr.vmem [resolvable:$true] %s292
      %295 = dma.vmem_to_hbm [thread:$0]  %s293, 16, %s5, [#allocation5]
    $region21: #{tpu_custom_call.1} parent=1 // pred_fallthru
      _
    // Predicated region
    $region22: #{tpu_custom_call.1} parent=1 // pred_check
      _
    $region23: #{tpu_custom_call.1} parent=1 // pred_check_branch
      %297 = sbr.rel (0) target = $region25
    $region24: #{tpu_custom_call.1} parent=1 // pred_region
      %298 = dma.done [#allocation5], 16
    $region25: #{tpu_custom_call.1} parent=1 // pred_fallthru
      _
    %299 = vsyncpa [#allocation5], 1

</llo_original>
